<compile_context>
chip_gen: v7x
topology: tpu7x:2x2x1
jax: 0.10.0
libtpu: 0.0.40
codegen_flags: <defaults>
</compile_context>

<pallas_src>
import functools
from typing import NamedTuple

import jax
import jax.numpy as jnp
from jax.experimental import pallas as pl
from jax.experimental.pallas import tpu as pltpu

LN_EPS = 1e-5      # nn.LayerNorm default
_LANE = 128


def _round_up(x, m):
    return ((x + m - 1) // m) * m


def _cdiv(a, b):
    return -(-a // b)


def _vmem_budget_bytes():
    try:
        return int(pltpu.get_tpu_info().vmem_capacity_bytes * 3 // 4)
    except Exception:
        return 48 * 1024 * 1024


def _num_tensorcores():
    try:
        return max(1, int(getattr(jax.devices()[0], "num_cores", 1)))
    except Exception:
        return 1


def _pick_k_tile(n_in_p, tk_max):
    """Largest 128-multiple <= tk_max that divides n_in_p exactly (no K zero-pad waste)."""
    kb = n_in_p // _LANE
    tkb = max(1, min(max(tk_max // _LANE, 1), kb))
    while tkb > 1 and kb % tkb != 0:
        tkb -= 1
    return tkb * _LANE


def _pick_batch_tile(batch, tb_max, row_align, want_two_tiles):
    """Batch tile so ceil(B/tb) tiles cover B with minimal padding."""
    b_a = _round_up(batch, row_align)
    num_b = max(1, _cdiv(b_a, tb_max))
    if want_two_tiles and num_b == 1 and b_a > 2 * row_align:
        num_b = 2          # give both TensorCores work on dual-core (v7x) parts
    tb = _round_up(_cdiv(b_a, num_b), row_align)
    return tb, tb * num_b


def _standard_layer_kernel(x_ref, w_ref, b_ref, g_ref, beta_ref, o_ref, acc_ref,
                           *, n_out_real, layer_norm):
    k = pl.program_id(1)

    # Fold the bias into the accumulator init.
    @pl.when(k == 0)
    def _():
        acc_ref[...] = jnp.broadcast_to(
            b_ref[...].astype(jnp.float32), acc_ref.shape)

    # MXU matmul over this K-slice, f32 accumulation.
    acc_ref[...] += jnp.dot(x_ref[...], w_ref[...],
                            preferred_element_type=jnp.float32)

    @pl.when(k == pl.num_programs(1) - 1)
    def _():
        acc = acc_ref[...]                              # (tb, n_out_p) f32
        if layer_norm:
            n_out_p = acc.shape[-1]
            pad = n_out_p - n_out_real
            inv_n = 1.0 / n_out_real
            # Padded output columns are exactly 0 (zero-padded W cols + zero
            # bias), so the lane-sum mean is exact.
            mean = jnp.sum(acc, axis=-1, keepdims=True) * inv_n
            d = acc - mean
            sq = jnp.sum(d * d, axis=-1, keepdims=True)
            if pad:
                # Each pad column contributes exactly (-mean)^2; subtract it
                # analytically instead of a full-tile iota/where mask.
                sq = sq - pad * (mean * mean)
            rinv = jax.lax.rsqrt(sq * inv_n + LN_EPS)   # rsqrt -> EUP slot
            y = (d * rinv) * g_ref[...] + beta_ref[...]
        else:
            y = acc
        o_ref[...] = jnp.maximum(y, 0.0).astype(o_ref.dtype)


class StandardLayerParams(NamedTuple):
    w_p: jax.Array          # (n_in_p, n_out_p), MXU dtype (bf16 recommended)
    b_p: jax.Array          # (1, n_out_p) f32
    g_p: jax.Array          # (1, n_out_p) f32
    be_p: jax.Array         # (1, n_out_p) f32
    n_in: int
    n_out: int
    layer_norm: bool


def prepare_standard_layer(w, b, gamma=None, beta=None, *, layer_norm=True,
                           mxu_dtype=jnp.bfloat16):
    """One-time parameter prep: lane-dense zero padding + MXU-operand cast.

    bf16 MXU operands are recommended on all TPU generations (v5e's MXU is
    bf16-native too); pass mxu_dtype=jnp.float32 for full-precision operands.
    Zero padding keeps both the matmul and the LayerNorm statistics exact.
    """
    n_in, n_out = w.shape
    if gamma is None:
        gamma = jnp.ones((n_out,), jnp.float32)
    if beta is None:
        beta = jnp.zeros((n_out,), jnp.float32)
    n_in_p = _round_up(n_in, _LANE)
    n_out_p = _round_up(n_out, _LANE)
    w_p = jnp.pad(w, ((0, n_in_p - n_in), (0, n_out_p - n_out)))
    if mxu_dtype is not None:
        w_p = w_p.astype(mxu_dtype)
    b_p = jnp.pad(b, (0, n_out_p - n_out)).reshape(1, n_out_p).astype(jnp.float32)
    g_p = jnp.pad(gamma, (0, n_out_p - n_out)).reshape(1, n_out_p).astype(jnp.float32)
    be_p = jnp.pad(beta, (0, n_out_p - n_out)).reshape(1, n_out_p).astype(jnp.float32)
    return StandardLayerParams(w_p, b_p, g_p, be_p, int(n_in), int(n_out),
                               bool(layer_norm))


def standard_layer(x, params: StandardLayerParams, *, tb=512, tk=512,
                   out_dtype=None, vmem_limit_bytes=None):
    """ReLU(LayerNorm(x @ W + b)).  x: (B, n_in) -> (B, n_out)."""
    B, n_in = x.shape
    assert n_in == params.n_in, "x feature dim does not match prepared params"
    n_in_p, n_out_p = params.w_p.shape
    mxu_dtype = params.w_p.dtype
    out_dtype = out_dtype if out_dtype is not None else x.dtype
    budget = int(vmem_limit_bytes) if vmem_limit_bytes else _vmem_budget_bytes()

    x_sz = jnp.dtype(mxu_dtype).itemsize
    w_sz = x_sz
    out_sz = jnp.dtype(out_dtype).itemsize
    row_align = 16 if x_sz < 4 else 8          # packed-sublane tile for bf16

    want_two = _num_tensorcores() >= 2
    tk_eff = _pick_k_tile(n_in_p, tk)
    tb_eff, B_p = _pick_batch_tile(B, tb, row_align, want_two)

    def fits(tb_, tk_):
        need = (2 * tb_ * tk_ * x_sz           # x double-buffer
                + 2 * tk_ * n_out_p * w_sz     # W K-slice double-buffer
                + tb_ * n_out_p * 4            # f32 accumulator
                + 2 * tb_ * n_out_p * out_sz   # output double-buffer
                + 6 * n_out_p * 4              # bias/gamma/beta buffers
                + (1 << 20))                   # headroom
        return need <= budget

    # Shrink K tile first (keeps the whole output row lane-dense), then batch.
    while not fits(tb_eff, tk_eff) and tk_eff > _LANE:
        new_tk = _pick_k_tile(n_in_p, tk_eff - _LANE)
        if new_tk == tk_eff:
            break
        tk_eff = new_tk
    while not fits(tb_eff, tk_eff) and tb_eff > row_align:
        new_tb, new_bp = _pick_batch_tile(B, max(row_align, tb_eff // 2),
                                          row_align, want_two)
        if new_tb == tb_eff:
            break
        tb_eff, B_p = new_tb, new_bp

    # Only the activation is padded/cast per call (weights were prepared once).
    x_p = jnp.pad(x, ((0, B_p - B), (0, n_in_p - n_in))).astype(mxu_dtype)

    grid = (B_p // tb_eff, n_in_p // tk_eff)

    kernel = functools.partial(_standard_layer_kernel,
                               n_out_real=params.n_out,
                               layer_norm=params.layer_norm)

    cost = pl.CostEstimate(
        flops=2 * B_p * n_in_p * n_out_p,
        transcendentals=B_p if params.layer_norm else 0,
        bytes_accessed=(x_p.size * x_sz
                        + grid[0] * params.w_p.size * w_sz  # W re-streamed per batch tile
                        + 3 * n_out_p * 4
                        + B_p * n_out_p * out_sz))

    out_p = pl.pallas_call(
        kernel,
        out_shape=jax.ShapeDtypeStruct((B_p, n_out_p), out_dtype),
        grid_spec=pltpu.PrefetchScalarGridSpec(
            num_scalar_prefetch=0,
            grid=grid,
            in_specs=[
                pl.BlockSpec((tb_eff, tk_eff), lambda i, k: (i, k)),    # x tile
                pl.BlockSpec((tk_eff, n_out_p), lambda i, k: (k, 0)),   # W K-slice
                pl.BlockSpec((1, n_out_p), lambda i, k: (0, 0)),        # bias
                pl.BlockSpec((1, n_out_p), lambda i, k: (0, 0)),        # LN gamma
                pl.BlockSpec((1, n_out_p), lambda i, k: (0, 0)),        # LN beta
            ],
            out_specs=pl.BlockSpec((tb_eff, n_out_p), lambda i, k: (i, 0)),
            scratch_shapes=[pltpu.VMEM((tb_eff, n_out_p), jnp.float32)],
        ),
        compiler_params=pltpu.CompilerParams(
            dimension_semantics=("parallel", "arbitrary"),
            vmem_limit_bytes=budget),
        cost_estimate=cost,
    )(x_p, params.w_p, params.b_p, params.g_p, params.be_p)

    return out_p[:B, :params.n_out]


def reference(x, w, b, gamma, beta, layer_norm=True):
    y = x @ w + b
    if layer_norm:
        mean = jnp.mean(y, axis=-1, keepdims=True)
        var = jnp.mean((y - mean) ** 2, axis=-1, keepdims=True)
        y = (y - mean) / jnp.sqrt(var + LN_EPS)
        y = y * gamma + beta
    return jnp.maximum(y, 0.0)


if __name__ == "__main__":
    key = jax.random.PRNGKey(0)

    # ---- test 1: non-lane-aligned shapes, single K step -------------------
    B, n_in, n_out = 16, 48, 40
    k_x, k_w, k_b = jax.random.split(key, 3)
    x = jax.random.normal(k_x, (B, n_in), dtype=jnp.float32)
    bound = 1.0 / (n_in ** 0.5)
    w = jax.random.uniform(k_w, (n_in, n_out), jnp.float32, -bound, bound)
    b = jax.random.uniform(k_b, (n_out,), jnp.float32, -bound, bound)
    gamma = jnp.ones((n_out,), jnp.float32)
    beta = jnp.zeros((n_out,), jnp.float32)

    ref = reference(x, w, b, gamma, beta)

    # f32 MXU operands -> tight tolerance.
    p_f32 = prepare_standard_layer(w, b, gamma, beta, mxu_dtype=jnp.float32)
    out = jax.block_until_ready(standard_layer(x, p_f32))
    assert out.shape == (B, n_out)
    assert jnp.allclose(out, ref, atol=1e-5, rtol=1e-5), "f32 mismatch vs reference"

    # bf16 MXU operands (default / recommended on all generations): looser
    # tolerance because LN stats come from bf16-operand products (f32 accum).
    p_bf16 = prepare_standard_layer(w, b, gamma, beta)  # mxu_dtype=bf16 default
    out_bf16 = jax.block_until_ready(standard_layer(x, p_bf16))
    assert jnp.allclose(out_bf16, ref, atol=3e-2, rtol=3e-2), "bf16 mismatch vs reference"

    # ---- test 2: multi-step K pipeline + no-LayerNorm path ----------------
    B2, n_in2, n_out2 = 20, 384, 40
    k_x2, k_w2, k_b2 = jax.random.split(jax.random.PRNGKey(1), 3)
    x2 = jax.random.normal(k_x2, (B2, n_in2), dtype=jnp.float32)
    bound2 = 1.0 / (n_in2 ** 0.5)
    w2 = jax.random.uniform(k_w2, (n_in2, n_out2), jnp.float32, -bound2, bound2)
    b2 = jax.random.uniform(k_b2, (n_out2,), jnp.float32, -bound2, bound2)

    ref2 = reference(x2, w2, b2, None, None, layer_norm=False)
    p2 = prepare_standard_layer(w2, b2, layer_norm=False, mxu_dtype=jnp.float32)
    out2 = jax.block_until_ready(standard_layer(x2, p2, tk=128))  # 3 K steps
    assert out2.shape == (B2, n_out2)
    assert jnp.allclose(out2, ref2, atol=1e-5, rtol=1e-5), "no-LN mismatch vs reference"

    print("KERNEL_OK")
</pallas_src>

<mosaic_0001>
module attributes {stable_mosaic.version = 11 : i64} {
  func.func @_standard_layer_kernel(%arg0: i32, %arg1: i32, %arg2: memref<16x128xf32, #tpu.memory_space<vmem>>, %arg3: memref<128x128xf32, #tpu.memory_space<vmem>>, %arg4: memref<1x128xf32, #tpu.memory_space<vmem>>, %arg5: memref<1x128xf32, #tpu.memory_space<vmem>>, %arg6: memref<1x128xf32, #tpu.memory_space<vmem>>, %arg7: memref<16x128xf32, #tpu.memory_space<vmem>>, %arg8: memref<16x128xf32, #tpu.memory_space<vmem>>) attributes {dimension_semantics = [#tpu.dimension_semantics<parallel>, #tpu.dimension_semantics<arbitrary>], iteration_bounds = array<i64: 1, 1>, scalar_prefetch = 0 : i64, scratch_operands = 1 : i64, tpu.core_type = #tpu.core_type<tc>, window_params = [{transform_indices = @transform_0, window_bounds = array<i64: 16, 128>}, {transform_indices = @transform_1, window_bounds = array<i64: 128, 128>}, {pipeline_mode = #tpu.pipeline_mode<synchronous>, transform_indices = @transform_2, window_bounds = array<i64: 1, 128>}, {pipeline_mode = #tpu.pipeline_mode<synchronous>, transform_indices = @transform_3, window_bounds = array<i64: 1, 128>}, {pipeline_mode = #tpu.pipeline_mode<synchronous>, transform_indices = @transform_4, window_bounds = array<i64: 1, 128>}, {transform_indices = @transform_5, window_bounds = array<i64: 16, 128>}]} {
    %c0_i32 = arith.constant 0 : i32
    %0 = arith.cmpi eq, %arg1, %c0_i32 : i32
    %1 = arith.extui %0 : i1 to i32
    %c0_i32_0 = arith.constant 0 : i32
    %2 = arith.cmpi ne, %1, %c0_i32_0 : i32
    scf.if %2 {
      %c0_10 = arith.constant 0 : index
      %c0_11 = arith.constant 0 : index
      %12 = vector.load %arg4[%c0_10, %c0_11] : memref<1x128xf32, #tpu.memory_space<vmem>>, vector<1x128xf32>
      %13 = vector.shape_cast %12 : vector<1x128xf32> to vector<1x128xf32>
      %14 = vector.broadcast %13 : vector<1x128xf32> to vector<16x128xf32>
      %c0_12 = arith.constant 0 : index
      %c0_13 = arith.constant 0 : index
      %15 = vector.load %arg8[%c0_12, %c0_13] : memref<16x128xf32, #tpu.memory_space<vmem>>, vector<16x128xf32>
      tpu.vector_store %arg8[%c0_12, %c0_13], %14 {strides = array<i32>} : memref<16x128xf32, #tpu.memory_space<vmem>>, vector<16x128xf32>,
    } else {
    }
    %c0 = arith.constant 0 : index
    %c0_1 = arith.constant 0 : index
    %3 = vector.load %arg8[%c0, %c0_1] : memref<16x128xf32, #tpu.memory_space<vmem>>, vector<16x128xf32>
    %c0_2 = arith.constant 0 : index
    %c0_3 = arith.constant 0 : index
    %4 = vector.load %arg2[%c0_2, %c0_3] : memref<16x128xf32, #tpu.memory_space<vmem>>, vector<16x128xf32>
    %c0_4 = arith.constant 0 : index
    %c0_5 = arith.constant 0 : index
    %5 = vector.load %arg3[%c0_4, %c0_5] : memref<128x128xf32, #tpu.memory_space<vmem>>, vector<128x128xf32>
    %cst = arith.constant dense<0.000000e+00> : vector<16x128xf32>
    %6 = tpu.matmul %4, %5, %cst {dimension_numbers = #tpu.dot_dimension_numbers<[1], [0], [0], [1], [0, 0, 1, 1], [], []>} : vector<16x128xf32>, vector<128x128xf32>, vector<16x128xf32> -> vector<16x128xf32>
    %7 = arith.addf %3, %6 : vector<16x128xf32>
    %c0_6 = arith.constant 0 : index
    %c0_7 = arith.constant 0 : index
    %8 = vector.load %arg8[%c0_6, %c0_7] : memref<16x128xf32, #tpu.memory_space<vmem>>, vector<16x128xf32>
    tpu.vector_store %arg8[%c0_6, %c0_7], %7 {strides = array<i32>} : memref<16x128xf32, #tpu.memory_space<vmem>>, vector<16x128xf32>,
    %c0_i32_8 = arith.constant 0 : i32
    %9 = arith.cmpi eq, %arg1, %c0_i32_8 : i32
    %10 = arith.extui %9 : i1 to i32
    %c0_i32_9 = arith.constant 0 : i32
    %11 = arith.cmpi ne, %10, %c0_i32_9 : i32
    scf.if %11 {
      %c0_10 = arith.constant 0 : index
      %c0_11 = arith.constant 0 : index
      %12 = vector.load %arg8[%c0_10, %c0_11] : memref<16x128xf32, #tpu.memory_space<vmem>>, vector<16x128xf32>
      %cst_12 = arith.constant dense<0.000000e+00> : vector<16xf32>
      %13 = vector.multi_reduction <add>, %12, %cst_12 [1] : vector<16x128xf32> to vector<16xf32>
      %14 = vector.shape_cast %13 : vector<16xf32> to vector<16x1xf32>
      %cst_13 = arith.constant 2.500000e-02 : f32
      %15 = vector.broadcast %cst_13 : f32 to vector<16x1xf32>
      %16 = arith.mulf %14, %15 : vector<16x1xf32>
      %17 = vector.broadcast %16 : vector<16x1xf32> to vector<16x128xf32>
      %18 = arith.subf %12, %17 : vector<16x128xf32>
      %19 = arith.mulf %18, %18 : vector<16x128xf32>
      %cst_14 = arith.constant dense<0.000000e+00> : vector<16xf32>
      %20 = vector.multi_reduction <add>, %19, %cst_14 [1] : vector<16x128xf32> to vector<16xf32>
      %21 = vector.shape_cast %20 : vector<16xf32> to vector<16x1xf32>
      %22 = arith.mulf %16, %16 : vector<16x1xf32>
      %cst_15 = arith.constant 8.800000e+01 : f32
      %23 = vector.broadcast %cst_15 : f32 to vector<16x1xf32>
      %24 = arith.mulf %23, %22 : vector<16x1xf32>
      %25 = arith.subf %21, %24 : vector<16x1xf32>
      %cst_16 = arith.constant 2.500000e-02 : f32
      %26 = vector.broadcast %cst_16 : f32 to vector<16x1xf32>
      %27 = arith.mulf %25, %26 : vector<16x1xf32>
      %cst_17 = arith.constant 9.99999974E-6 : f32
      %28 = vector.broadcast %cst_17 : f32 to vector<16x1xf32>
      %29 = arith.addf %27, %28 : vector<16x1xf32>
      %30 = math.rsqrt %29 : vector<16x1xf32>
      %31 = vector.broadcast %30 : vector<16x1xf32> to vector<16x128xf32>
      %32 = arith.mulf %18, %31 : vector<16x128xf32>
      %c0_18 = arith.constant 0 : index
      %c0_19 = arith.constant 0 : index
      %33 = vector.load %arg5[%c0_18, %c0_19] : memref<1x128xf32, #tpu.memory_space<vmem>>, vector<1x128xf32>
      %34 = vector.broadcast %33 : vector<1x128xf32> to vector<16x128xf32>
      %35 = arith.mulf %32, %34 : vector<16x128xf32>
      %c0_20 = arith.constant 0 : index
      %c0_21 = arith.constant 0 : index
      %36 = vector.load %arg6[%c0_20, %c0_21] : memref<1x128xf32, #tpu.memory_space<vmem>>, vector<1x128xf32>
      %37 = vector.broadcast %36 : vector<1x128xf32> to vector<16x128xf32>
      %38 = arith.addf %35, %37 : vector<16x128xf32>
      %cst_22 = arith.constant 0.000000e+00 : f32
      %39 = vector.broadcast %cst_22 : f32 to vector<16x128xf32>
      %40 = arith.maximumf %38, %39 : vector<16x128xf32>
      %c0_23 = arith.constant 0 : index
      %c0_24 = arith.constant 0 : index
      %41 = vector.load %arg7[%c0_23, %c0_24] : memref<16x128xf32, #tpu.memory_space<vmem>>, vector<16x128xf32>
      tpu.vector_store %arg7[%c0_23, %c0_24], %40 {strides = array<i32>} : memref<16x128xf32, #tpu.memory_space<vmem>>, vector<16x128xf32>,
    } else {
    }
    return
  }
  func.func @transform_0(%arg0: i32, %arg1: i32) -> (i32, i32) {
    %c0_i32 = arith.constant 0 : i32
    return %arg0, %arg1 : i32, i32
  }
  func.func @transform_1(%arg0: i32, %arg1: i32) -> (i32, i32) {
    %c0_i32 = arith.constant 0 : i32
    %c0_i32_0 = arith.constant 0 : i32
    return %arg1, %c0_i32 : i32, i32
  }
  func.func @transform_2(%arg0: i32, %arg1: i32) -> (i32, i32) {
    %c0_i32 = arith.constant 0 : i32
    %c0_i32_0 = arith.constant 0 : i32
    %c0_i32_1 = arith.constant 0 : i32
    return %c0_i32, %c0_i32_0 : i32, i32
  }
  func.func @transform_3(%arg0: i32, %arg1: i32) -> (i32, i32) {
    %c0_i32 = arith.constant 0 : i32
    %c0_i32_0 = arith.constant 0 : i32
    %c0_i32_1 = arith.constant 0 : i32
    return %c0_i32, %c0_i32_0 : i32, i32
  }
  func.func @transform_4(%arg0: i32, %arg1: i32) -> (i32, i32) {
    %c0_i32 = arith.constant 0 : i32
    %c0_i32_0 = arith.constant 0 : i32
    %c0_i32_1 = arith.constant 0 : i32
    return %c0_i32, %c0_i32_0 : i32, i32
  }
  func.func @transform_5(%arg0: i32, %arg1: i32) -> (i32, i32) {
    %c0_i32 = arith.constant 0 : i32
    %c0_i32_0 = arith.constant 0 : i32
    return %arg0, %c0_i32 : i32, i32
  }
}

</mosaic_0001>

<llo_original>
// kernel: tpu_custom_call.1
$region0: #{tpu_custom_call.1}
  #allocation0 [shape = 'u32[]', space=smem, size = 0x4, offset = 0x4, fixed_abs, tag = 'smem constant byte address 0x4 - core index']
  #allocation1 [shape = 'u32[144,128]{1,0:T(1,128)}', space=vmem, size = 0x12000, scoped, tag = 'internal scratch']
  #allocation2 [shape = 'f32[16,128]{1,0:T(8,128)}', space=vmem, size = 0x2000, scoped, tag = 'scratch operand']
  %s0 = inlined_call_operand.hbm [shape: f32[16,128], index: 0, kind: input, shape index: {}]
  %s1 = inlined_call_operand.hbm [shape: f32[128,128], index: 1, kind: input, shape index: {}]
  %s2 = inlined_call_operand.vmem [shape: f32[1,128], index: 2, kind: input, shape index: {}]
  %s3 = inlined_call_operand.vmem [shape: f32[1,128], index: 3, kind: input, shape index: {}]
  %s4 = inlined_call_operand.vmem [shape: f32[1,128], index: 4, kind: input, shape index: {}]
  %s5 = inlined_call_operand.hbm [shape: f32[16,128], index: 5, kind: output, shape index: {}]
  %s6 = sld [smem:[#allocation0]]
  $region46: #{tpu_custom_call.1} parent=0
    _
  %s8 = ssub.s32 1, %s6
  %s9 = scalar_select 0, %s8, %s6
  $region1: #{tpu_custom_call.1} parent=0
    #allocation3 [shape = 'u8[8192]{0}', space=vmem, size = 0x2000, scoped, tag = 'input window, operand 0, single buffered']
    #allocation4 [shape = 's32[1]{0}', space=sflag, size = 0x4, scoped, tag = 'scoped memory for tpu_custom_call.1']
    #allocation5 [shape = 's32[1]{0}', space=sflag, size = 0x4, scoped, tag = 'scoped memory for tpu_custom_call.1']
    #allocation6 [shape = 'u8[65536]{0}', space=vmem, size = 0x10000, scoped, tag = 'input window, operand 1, single buffered']
    #allocation7 [shape = 's32[1]{0}', space=sflag, size = 0x4, scoped, tag = 'scoped memory for tpu_custom_call.1']
    #allocation8 [shape = 'u8[8192]{0}', space=vmem, size = 0x2000, scoped, tag = 'output window, operand 0, single buffered']
    %10 = vsyncpa [#allocation4], 0
    %11 = vsyncpa [#allocation7], 0
    %12 = vsyncpa [#allocation5], 0
    // Predicated region
    $region2: #{tpu_custom_call.1} parent=1 // pred_check
      _
    $region3: #{tpu_custom_call.1} parent=1 // pred_check_branch
      %14 = sbr.rel (0) target = $region5
    $region4: #{tpu_custom_call.1} parent=1 // pred_region
      %s16 = ssub.s32 256, 256
      %17 = vsyncadd [#allocation4], %s16
      %s18 = sshll.u32 [#allocation3], 4
      %s19 = int_to_ptr.vmem [resolvable:$true] %s18
      %24 = dma.hbm_to_vmem [thread:$0]  %s0, 256, %s19, [#allocation4], 128, 128, 8
    $region5: #{tpu_custom_call.1} parent=1 // pred_fallthru
      _
    // Predicated region
    $region6: #{tpu_custom_call.1} parent=1 // pred_check
      _
    $region7: #{tpu_custom_call.1} parent=1 // pred_check_branch
      %26 = sbr.rel (0) target = $region9
    $region8: #{tpu_custom_call.1} parent=1 // pred_region
      %s28 = ssub.s32 2048, 2048
      %29 = vsyncadd [#allocation7], %s28
      %s30 = sshll.u32 [#allocation6], 4
      %s31 = int_to_ptr.vmem [resolvable:$true] %s30
      %36 = dma.hbm_to_vmem [thread:$0]  %s1, 2048, %s31, [#allocation7], 128, 128, 8
    $region9: #{tpu_custom_call.1} parent=1 // pred_fallthru
      _
    // Predicated region
    $region10: #{tpu_custom_call.1} parent=1 // pred_check
      _
    $region11: #{tpu_custom_call.1} parent=1 // pred_check_branch
      %38 = sbr.rel (0) target = $region13
    $region12: #{tpu_custom_call.1} parent=1 // pred_region
      _
    $region13: #{tpu_custom_call.1} parent=1 // pred_fallthru
      _
    // Predicated region
    $region14: #{tpu_custom_call.1} parent=1 // pred_check
      _
    $region15: #{tpu_custom_call.1} parent=1 // pred_check_branch
      %40 = sbr.rel (0) target = $region17
    $region16: #{tpu_custom_call.1} parent=1 // pred_region
      _
    $region17: #{tpu_custom_call.1} parent=1 // pred_fallthru
      _
    // Predicated region
    $region18: #{tpu_custom_call.1} parent=1 // pred_check
      _
    $region19: #{tpu_custom_call.1} parent=1 // pred_check_branch
      %42 = sbr.rel (0) target = $region21
    $region20: #{tpu_custom_call.1} parent=1 // pred_region
      _
    $region21: #{tpu_custom_call.1} parent=1 // pred_fallthru
      _
    // Predicated region
    $region22: #{tpu_custom_call.1} parent=1 // pred_check
      _
    $region23: #{tpu_custom_call.1} parent=1 // pred_check_branch
      %44 = sbr.rel (0) target = $region25
    $region24: #{tpu_custom_call.1} parent=1 // pred_region
      %45 = dma.done [#allocation4], 256
    $region25: #{tpu_custom_call.1} parent=1 // pred_fallthru
      _
    // Predicated region
    $region26: #{tpu_custom_call.1} parent=1 // pred_check
      _
    $region27: #{tpu_custom_call.1} parent=1 // pred_check_branch
      %47 = sbr.rel (0) target = $region29
    $region28: #{tpu_custom_call.1} parent=1 // pred_region
      %48 = dma.done [#allocation7], 2048
    $region29: #{tpu_custom_call.1} parent=1 // pred_fallthru
      _
    %p49 = scmp.eq.s32.totalorder 0, 0
    // Predicated region
    $region30: #{tpu_custom_call.1} parent=1 // pred_check
      %p50 = pneg %p49
    $region31: #{tpu_custom_call.1} parent=1 // pred_check_branch
      %52 = sbr.rel (%p50) target = $region33
    $region32: #{tpu_custom_call.1} parent=1 // pred_region
      %v53 = vld [vmem:[%s2] sm:$0x1]
      %v55 = vlaneseq
      %v56 = vshrl.u32 %v55, 7
      %v57 = vsub.s32 0, %v56
      %v58 = vrot.slane %v53, %v57
      %60 = vst [vmem:[#allocation2] sm:$0xff] %v58
      %61 = vst [vmem:[#allocation2 + $0x8] sm:$0xff] %v58
    $region33: #{tpu_custom_call.1} parent=1 // pred_fallthru
      _
    %v62 = vld [vmem:[#allocation2] sm:$0xff]
    %v63 = vld [vmem:[#allocation2 + $0x8] sm:$0xff]
    %v64 = vld [vmem:[#allocation3] sm:$0xff]
    %v65 = vld [vmem:[#allocation3 + $0x8] sm:$0xff]
    %v66 = vld [vmem:[#allocation6] sm:$0xff]
    %v67 = vld [vmem:[#allocation6 + $0x8] sm:$0xff]
    %v68 = vld [vmem:[#allocation6 + $0x10] sm:$0xff]
    %v69 = vld [vmem:[#allocation6 + $0x18] sm:$0xff]
    %v70 = vld [vmem:[#allocation6 + $0x20] sm:$0xff]
    %v71 = vld [vmem:[#allocation6 + $0x28] sm:$0xff]
    %v72 = vld [vmem:[#allocation6 + $0x30] sm:$0xff]
    %v73 = vld [vmem:[#allocation6 + $0x38] sm:$0xff]
    %v74 = vld [vmem:[#allocation6 + $0x40] sm:$0xff]
    %v75 = vld [vmem:[#allocation6 + $0x48] sm:$0xff]
    %v76 = vld [vmem:[#allocation6 + $0x50] sm:$0xff]
    %v77 = vld [vmem:[#allocation6 + $0x58] sm:$0xff]
    %v78 = vld [vmem:[#allocation6 + $0x60] sm:$0xff]
    %v79 = vld [vmem:[#allocation6 + $0x68] sm:$0xff]
    %v80 = vld [vmem:[#allocation6 + $0x70] sm:$0xff]
    %v81 = vld [vmem:[#allocation6 + $0x78] sm:$0xff]
    %82 = vmatprep.subr.mxu0 0.0
    %83 = vmatpush1.msra.mxu0 %v66
    %84 = vmatprep.subr.mxu0 0.0
    %85 = vmatpush1.msra.mxu0 %v67
    %86 = vmatprep.subr.mxu0 0.0
    %87 = vmatpush1.msra.mxu0 %v68
    %88 = vmatprep.subr.mxu0 0.0
    %89 = vmatpush1.msra.mxu0 %v69
    %90 = vmatprep.subr.mxu0 0.0
    %91 = vmatpush1.msra.mxu0 %v70
    %92 = vmatprep.subr.mxu0 0.0
    %93 = vmatpush1.msra.mxu0 %v71
    %94 = vmatprep.subr.mxu0 0.0
    %95 = vmatpush1.msra.mxu0 %v72
    %96 = vmatprep.subr.mxu0 0.0
    %97 = vmatpush1.msra.mxu0 %v73
    %98 = vmatprep.subr.mxu0 0.0
    %99 = vmatpush1.msra.mxu0 %v74
    %100 = vmatprep.subr.mxu0 0.0
    %101 = vmatpush1.msra.mxu0 %v75
    %102 = vmatprep.subr.mxu0 0.0
    %103 = vmatpush1.msra.mxu0 %v76
    %104 = vmatprep.subr.mxu0 0.0
    %105 = vmatpush1.msra.mxu0 %v77
    %106 = vmatprep.subr.mxu0 0.0
    %107 = vmatpush1.msra.mxu0 %v78
    %108 = vmatprep.subr.mxu0 0.0
    %109 = vmatpush1.msra.mxu0 %v79
    %110 = vmatprep.subr.mxu0 0.0
    %111 = vmatpush1.msra.mxu0 %v80
    %112 = vmatprep.subr.mxu0 0.0
    %113 = vmatpush1.msra.mxu0 %v81
    %114 = vmatprep.subr.mxu0 0.0
    %115 = vmatpush1.msra.mxu0 0.0
    %116 = vmatprep.subr.mxu0 0.0
    %117 = vmatpush1.msra.mxu0 0.0
    %118 = vmatprep.subr.mxu0 0.0
    %119 = vmatpush1.msra.mxu0 0.0
    %120 = vmatprep.subr.mxu0 0.0
    %121 = vmatpush1.msra.mxu0 0.0
    %122 = vmatprep.subr.mxu0 0.0
    %123 = vmatpush1.msra.mxu0 0.0
    %124 = vmatprep.subr.mxu0 0.0
    %125 = vmatpush1.msra.mxu0 0.0
    %126 = vmatprep.subr.mxu0 0.0
    %127 = vmatpush1.msra.mxu0 0.0
    %128 = vmatprep.subr.mxu0 0.0
    %129 = vmatpush1.msra.mxu0 0.0
    %130 = vmatprep.subr.mxu0 0.0
    %131 = vmatpush1.msra.mxu0 0.0
    %132 = vmatprep.subr.mxu0 0.0
    %133 = vmatpush1.msra.mxu0 0.0
    %134 = vmatprep.subr.mxu0 0.0
    %135 = vmatpush1.msra.mxu0 0.0
    %136 = vmatprep.subr.mxu0 0.0
    %137 = vmatpush1.msra.mxu0 0.0
    %138 = vmatprep.subr.mxu0 0.0
    %139 = vmatpush1.msra.mxu0 0.0
    %140 = vmatprep.subr.mxu0 0.0
    %141 = vmatpush1.msra.mxu0 0.0
    %142 = vmatprep.subr.mxu0 0.0
    %143 = vmatpush1.msra.mxu0 0.0
    %144 = vmatprep.subr.mxu0 0.0
    %145 = vmatpush1.msra.mxu0 0.0
    %146 = vmatprep.mubr.f32.mxu0 0.0
    %147 = vmatmul.mubr.f32.gmra.mrb[0].mxu0 %v64
    %v148 = vpop.f32.mrb[0].mxu0
    %v149 = vadd.f32 0.0, %v148
    %v150 = vpop.f32.mrb[0].mxu0
    %151 = vmatprep.mubr.f32.mxu0 0.0
    %152 = vmatmul.mubr.f32.gmra.mrb[0].mxu0 %v65
    %v153 = vpop.f32.mrb[0].mxu0
    %v154 = vadd.f32 0.0, %v153
    %v155 = vpop.f32.mrb[0].mxu0
    %156 = vdwg.mxu0
    %v157 = vadd.f32 %v62, %v149
    %v158 = vadd.f32 %v63, %v154
    %159 = vst [vmem:[#allocation2] sm:$0xff] %v157
    %160 = vst [vmem:[#allocation2 + $0x8] sm:$0xff] %v158
    // Predicated region
    $region34: #{tpu_custom_call.1} parent=1 // pred_check
      %p161 = pneg %p49
    $region35: #{tpu_custom_call.1} parent=1 // pred_check_branch
      %163 = sbr.rel (%p161) target = $region37
    $region36: #{tpu_custom_call.1} parent=1 // pred_region
      %v164 = vld [vmem:[#allocation2] sm:$0xff]
      %v165 = vld [vmem:[#allocation2 + $0x8] sm:$0xff]
      %166 = vadd.xlane.f32.xlu0 %v164
      %v167 = vpop.xlane.xlu0 %166
      %168 = vadd.xlane.f32.xlu0 %v165
      %v169 = vpop.xlane.xlu0 %168
      %v170 = vmul.f32 %v167, 0.025
      %v171 = vmul.f32 %v169, 0.025
      %v172 = vsub.f32 %v164, %v170
      %v173 = vsub.f32 %v165, %v171
      %v174 = vmul.f32 %v172, %v172
      %v175 = vmul.f32 %v173, %v173
      %176 = vadd.xlane.f32.xlu0 %v174
      %v177 = vpop.xlane.xlu0 %176
      %178 = vadd.xlane.f32.xlu0 %v175
      %v179 = vpop.xlane.xlu0 %178
      %v180 = vmul.f32 %v170, %v170
      %v181 = vmul.f32 %v171, %v171
      %v182 = vmul.f32 %v180, 88.0
      %v183 = vmul.f32 %v181, 88.0
      %v184 = vsub.f32 %v177, %v182
      %v185 = vsub.f32 %v179, %v183
      %v186 = vmul.f32 %v184, 0.025
      %v187 = vmul.f32 %v185, 0.025
      %v188 = vadd.f32 %v186, 1e-05
      %v189 = vadd.f32 %v187, 1e-05
      %v190 = vrsqrt.pop %v188
      %v191 = vrsqrt.pop %v189
      %v192 = vmul.f32 %v172, %v190
      %v193 = vmul.f32 %v173, %v191
      %v194 = vld [vmem:[%s3] sm:$0x1]
      %v196 = vlaneseq
      %v197 = vshrl.u32 %v196, 7
      %v198 = vsub.s32 0, %v197
      %v199 = vrot.slane %v194, %v198
      %v201 = vmul.f32 %v192, %v199
      %v202 = vmul.f32 %v193, %v199
      %v203 = vld [vmem:[%s4] sm:$0x1]
      %v205 = vlaneseq
      %v206 = vshrl.u32 %v205, 7
      %v207 = vsub.s32 0, %v206
      %v208 = vrot.slane %v203, %v207
      %v210 = vadd.f32 %v201, %v208
      %v211 = vadd.f32 %v202, %v208
      %v212 = vmax.f32 %v210, 0.0
      %v213 = vmax.f32 %v211, 0.0
      %214 = vst [vmem:[#allocation8] sm:$0xff] %v212
      %215 = vst [vmem:[#allocation8 + $0x8] sm:$0xff] %v213
    $region37: #{tpu_custom_call.1} parent=1 // pred_fallthru
      _
    // Predicated region
    $region38: #{tpu_custom_call.1} parent=1 // pred_check
      _
    $region39: #{tpu_custom_call.1} parent=1 // pred_check_branch
      %217 = sbr.rel (0) target = $region41
    $region40: #{tpu_custom_call.1} parent=1 // pred_region
      %s219 = ssub.s32 256, 256
      %220 = vsyncadd [#allocation5], %s219
      %s221 = sshll.u32 [#allocation8], 4
      %s222 = int_to_ptr.vmem [resolvable:$true] %s221
      %227 = dma.vmem_to_hbm [thread:$0]  %s222, 256, %s5, [#allocation5], 128, 128, 8
    $region41: #{tpu_custom_call.1} parent=1 // pred_fallthru
      _
    // Predicated region
    $region42: #{tpu_custom_call.1} parent=1 // pred_check
      _
    $region43: #{tpu_custom_call.1} parent=1 // pred_check_branch
      %229 = sbr.rel (0) target = $region45
    $region44: #{tpu_custom_call.1} parent=1 // pred_region
      %230 = dma.done [#allocation5], 256
    $region45: #{tpu_custom_call.1} parent=1 // pred_fallthru
      _
    %231 = vsyncpa [#allocation4], 1
    %232 = vsyncpa [#allocation7], 1
    %233 = vsyncpa [#allocation5], 1

</llo_original>
